<compile_context>
chip_gen: v5e
topology: v5e:2x2
jax: 0.10.0
libtpu: 0.0.40
codegen_flags: <defaults>
</compile_context>

<pallas_src>
import functools

import jax
import jax.numpy as jnp
import numpy as np
from jax.experimental import pallas as pl
from jax.experimental.pallas import tpu as pltpu

B, N, R = 2, 16, 4            # batch, spatial size (H == W == N), number of target regions
OUT_LANES = 128               # lane-dense output width (the R logits live in the first lanes)
WAVELENGTH = 633e-9
APERTURE = 1.0e-3             # physical side length of the field
DISTS = (0.05, 0.08)          # the two propagation distances


# ----------------------------- host-side parameter setup ---------------------------
def _build_optics(n, wavelength, side, dists):
    """Complex pieces of the optical chain (numpy, float64/complex128)."""
    idx = np.arange(n)
    ang = -2.0 * np.pi * np.outer(idx, idx) / n
    F = np.exp(1j * ang)                      # forward DFT matrix (symmetric)
    G = np.conj(F) / n                        # inverse DFT matrix

    def transfer(z):
        # TODO(synk): exact `propagation_sinc_prepare` source not provided; using a
        # band-limited angular-spectrum transfer function (piston term removed).
        fx = np.fft.fftfreq(n, d=side / n)
        FX, FY = np.meshgrid(fx, fx, indexing="ij")
        arg = 1.0 - (wavelength * FX) ** 2 - (wavelength * FY) ** 2
        k = 2.0 * np.pi / wavelength
        phase = k * z * (np.sqrt(np.clip(arg, 0.0, None)) - 1.0)
        return np.where(arg > 0.0, np.exp(1j * phase), 0.0 + 0.0j)

    H1, H2 = transfer(dists[0]), transfer(dists[1])

    # TODO(synk): LayeredBSpline.eval (spline phase) not provided; deterministic smooth
    # phase surface used instead.  DOE multiplier W = exp(i * phi).
    c = np.linspace(-side / 2, side / 2, n) / (side / 2)
    X, Y = np.meshgrid(c, c, indexing="ij")
    phi = 2.0 * np.pi * (0.35 * X * X + 0.20 * Y * Y + 0.15 * X * Y + 0.05 * X - 0.10 * Y)
    W = np.exp(1j * phi)
    return F, G, H1, H2, W


def _chain_batch(U, F, G, H1, H2, W):
    """Apply the full (linear) optical chain to a batch of complex fields (K, N, N)."""
    T = np.einsum("ij,kjl,lm->kim", F, U, F) * H1[None]
    T = np.einsum("ij,kjl,lm->kim", G, T, G)
    T = T * W[None]
    T = np.einsum("ij,kjl,lm->kim", F, T, F) * H2[None]
    T = np.einsum("ij,kjl,lm->kim", G, T, G)
    return T


def _fused_operator(n, F, G, H1, H2, W):
    """Real (2n^2, 2n^2) right-multiply operator for the whole linear chain.

    With row-major flattening, chain(v).flat == v.flat @ M (complex); for the stacked
    real field xs = [vr | vi]:  xs @ A == [Re | Im] of chain(v).flat, where
    A = [[Mr, Mi], [-Mi, Mr]].
    """
    eye = np.eye(n * n, dtype=np.complex128).reshape(n * n, n, n)
    M = _chain_batch(eye, F, G, H1, H2, W).reshape(n * n, n * n)
    A = np.block([[M.real, M.imag], [-M.imag, M.real]]).astype(np.float32)
    return jnp.asarray(A)


def _target_regions(n):
    half = np.arange(n) < n // 2
    masks = []
    for rh in (half, ~half):
        for ch in (half, ~half):
            masks.append(np.outer(rh, ch).astype(np.float64))
    return np.stack(masks)                    # (R, n, n) quadrant masks


def _target_matrix(t_rhw, n, out_lanes):
    r = t_rhw.shape[0]
    t = np.zeros((n * n, out_lanes), dtype=np.float32)
    t[:, :r] = t_rhw.reshape(r, n * n).T      # row-major pixel order, lane-padded
    return jnp.asarray(t)


# ---------------------------------- Pallas kernel ----------------------------------
def _simple_layered_dnn_kernel(xs_ref, a_ref, t_ref, out_ref, *, n2, num_regions):
    # One fused MXU matmul applies both propagations and the DOE phase:
    # (B, 2n^2) @ (2n^2, 2n^2) -> (B, 2n^2), real/imag stacked along lanes.
    u = jnp.dot(xs_ref[...], a_ref[...], preferred_element_type=jnp.float32)
    ur = u[:, :n2]                            # 128-aligned lane slices, no relayout
    ui = u[:, n2:]
    intensity = ur * ur + ui * ui             # |u|^2, (B, n^2)
    # Per-region sums as one lane-dense matmul (T pre-flattened, padded to 128 lanes).
    logits = jnp.dot(intensity, t_ref[...], preferred_element_type=jnp.float32)  # (B, 128)
    # Masked softmax over the first `num_regions` lanes (padded lanes contribute 0).
    lane = jax.lax.broadcasted_iota(jnp.int32, logits.shape, 1)
    valid = lane < num_regions
    z = jnp.where(valid, logits, jnp.float32(-1e30))
    m = jnp.max(z, axis=1, keepdims=True)
    e = jnp.where(valid, jnp.exp(z - m), jnp.float32(0.0))
    denom = jnp.sum(e, axis=1, keepdims=True)
    out_ref[...] = e * pl.reciprocal(denom, approx=True)


def simple_layered_dnn(xr, xi, a_op, t_mat, num_regions):
    b, n, _ = xr.shape
    n2 = n * n
    # Flatten & stack real/imag on the host side; B folds into the matmul M dimension,
    # so the kernel runs as a single invocation (no grid -> no per-step overhead).
    xs = jnp.concatenate([xr.reshape(b, n2), xi.reshape(b, n2)], axis=1)     # (B, 2n^2)
    kernel = functools.partial(_simple_layered_dnn_kernel, n2=n2, num_regions=num_regions)
    out = pl.pallas_call(
        kernel,
        out_shape=jax.ShapeDtypeStruct((b, t_mat.shape[1]), jnp.float32),
        in_specs=[pl.BlockSpec(memory_space=pltpu.MemorySpace.VMEM) for _ in range(3)],
        out_specs=pl.BlockSpec(memory_space=pltpu.MemorySpace.VMEM),
    )(xs, a_op, t_mat)
    return out[:, :num_regions]                                              # (B, R)


# ----------------------------- pure-numpy reference (check) ------------------------
def reference(xr, xi, F, G, H1, H2, W, t_rhw):
    x = np.asarray(xr, dtype=np.float64) + 1j * np.asarray(xi, dtype=np.float64)

    def prop(u, H):
        U = np.einsum("ij,bjk,kl->bil", F, u, F) * H[None]
        return np.einsum("ij,bjk,kl->bil", G, U, G)

    u = prop(x, H1)
    u = u * W[None]
    u = prop(u, H2)
    inten = np.abs(u) ** 2
    vals = np.sum(inten[:, None, :, :] * t_rhw[None], axis=(-2, -1))
    e = np.exp(vals - vals.max(axis=1, keepdims=True))
    return e / e.sum(axis=1, keepdims=True)


if __name__ == "__main__":
    key = jax.random.PRNGKey(0)
    kr, ki = jax.random.split(key)
    xr = 0.05 * jax.random.normal(kr, (B, N, N), dtype=jnp.float32)
    xi = 0.05 * jax.random.normal(ki, (B, N, N), dtype=jnp.float32)

    F, G, H1, H2, W = _build_optics(N, WAVELENGTH, APERTURE, DISTS)
    a_op = _fused_operator(N, F, G, H1, H2, W)      # (2N^2, 2N^2) = (512, 512) f32, 1 MiB
    t_rhw = _target_regions(N)                      # (R, N, N) quadrant masks
    t_mat = _target_matrix(t_rhw, N, OUT_LANES)     # (N^2, 128), lane-dense

    out = simple_layered_dnn(xr, xi, a_op, t_mat, R)
    out = jax.block_until_ready(out)

    ref = reference(np.asarray(xr), np.asarray(xi), F, G, H1, H2, W, t_rhw)
    np.testing.assert_allclose(np.asarray(out), ref, rtol=5e-2, atol=1e-2)

    print("KERNEL_OK")
</pallas_src>

<mosaic_0001>
module attributes {stable_mosaic.version = 11 : i64} {
  func.func @_simple_layered_dnn_kernel(%arg0: memref<2x512xf32, #tpu.memory_space<vmem>>, %arg1: memref<512x512xf32, #tpu.memory_space<vmem>>, %arg2: memref<256x128xf32, #tpu.memory_space<vmem>>, %arg3: memref<2x128xf32, #tpu.memory_space<vmem>>) attributes {dimension_semantics = [], scalar_prefetch = 0 : i64, scratch_operands = 0 : i64, tpu.core_type = #tpu.core_type<tc>} {
    %c0 = arith.constant 0 : index
    %c0_0 = arith.constant 0 : index
    %0 = vector.load %arg0[%c0, %c0_0] : memref<2x512xf32, #tpu.memory_space<vmem>>, vector<2x512xf32>
    %c0_1 = arith.constant 0 : index
    %c0_2 = arith.constant 0 : index
    %1 = vector.load %arg1[%c0_1, %c0_2] : memref<512x512xf32, #tpu.memory_space<vmem>>, vector<512x512xf32>
    %cst = arith.constant dense<0.000000e+00> : vector<2x512xf32>
    %2 = tpu.matmul %0, %1, %cst {dimension_numbers = #tpu.dot_dimension_numbers<[1], [0], [0], [1], [0, 0, 1, 1], [], []>} : vector<2x512xf32>, vector<512x512xf32>, vector<2x512xf32> -> vector<2x512xf32>
    %3 = vector.extract_strided_slice %2 {offsets = [0, 0], sizes = [2, 256], strides = [1, 1]} : vector<2x512xf32> to vector<2x256xf32>
    %4 = vector.extract_strided_slice %2 {offsets = [0, 256], sizes = [2, 256], strides = [1, 1]} : vector<2x512xf32> to vector<2x256xf32>
    %5 = arith.mulf %3, %3 : vector<2x256xf32>
    %6 = arith.mulf %4, %4 : vector<2x256xf32>
    %7 = arith.addf %5, %6 : vector<2x256xf32>
    %c0_3 = arith.constant 0 : index
    %c0_4 = arith.constant 0 : index
    %8 = vector.load %arg2[%c0_3, %c0_4] : memref<256x128xf32, #tpu.memory_space<vmem>>, vector<256x128xf32>
    %cst_5 = arith.constant dense<0.000000e+00> : vector<2x128xf32>
    %9 = tpu.matmul %7, %8, %cst_5 {dimension_numbers = #tpu.dot_dimension_numbers<[1], [0], [0], [1], [0, 0, 1, 1], [], []>} : vector<2x256xf32>, vector<256x128xf32>, vector<2x128xf32> -> vector<2x128xf32>
    %10 = tpu.iota {dimensions = array<i32: 1>} : vector<2x128xi32>
    %c4_i32 = arith.constant 4 : i32
    %11 = vector.broadcast %c4_i32 : i32 to vector<2x128xi32>
    %12 = arith.cmpi slt, %10, %11 : vector<2x128xi32>
    %cst_6 = arith.constant -1.000000e+30 : f32
    %13 = vector.broadcast %cst_6 : f32 to vector<2x128xf32>
    %14 = arith.select %12, %9, %13 : vector<2x128xi1>, vector<2x128xf32>
    %cst_7 = arith.constant dense<0xFF800000> : vector<2xf32>
    %15 = vector.multi_reduction <maximumf>, %14, %cst_7 [1] : vector<2x128xf32> to vector<2xf32>
    %16 = vector.shape_cast %15 : vector<2xf32> to vector<2x1xf32>
    %17 = vector.broadcast %16 : vector<2x1xf32> to vector<2x128xf32>
    %18 = arith.subf %14, %17 : vector<2x128xf32>
    %19 = math.exp %18 : vector<2x128xf32>
    %cst_8 = arith.constant 0.000000e+00 : f32
    %20 = vector.broadcast %cst_8 : f32 to vector<2x128xf32>
    %21 = arith.select %12, %19, %20 : vector<2x128xi1>, vector<2x128xf32>
    %cst_9 = arith.constant dense<0.000000e+00> : vector<2xf32>
    %22 = vector.multi_reduction <add>, %21, %cst_9 [1] : vector<2x128xf32> to vector<2xf32>
    %23 = vector.shape_cast %22 : vector<2xf32> to vector<2x1xf32>
    %24 = tpu.reciprocal %23 {approx = true} : vector<2x1xf32> -> vector<2x1xf32>
    %25 = vector.broadcast %24 : vector<2x1xf32> to vector<2x128xf32>
    %26 = arith.mulf %21, %25 : vector<2x128xf32>
    %c0_10 = arith.constant 0 : index
    %c0_11 = arith.constant 0 : index
    %27 = vector.load %arg3[%c0_10, %c0_11] : memref<2x128xf32, #tpu.memory_space<vmem>>, vector<2x128xf32>
    tpu.vector_store %arg3[%c0_10, %c0_11], %26 {strides = array<i32>} : memref<2x128xf32, #tpu.memory_space<vmem>>, vector<2x128xf32>,
    return
  }
}

</mosaic_0001>

<llo_original>
// kernel: tpu_custom_call.1
$region0: #{tpu_custom_call.1}
  #allocation0 [shape = 'u32[]', space=smem, size = 0x4, offset = 0x4, fixed_abs, tag = 'smem constant byte address 0x4 - core index']
  #allocation1 [shape = 'u32[72,128]{1,0:T(1,128)}', space=vmem, size = 0x9000, scoped, tag = 'internal scratch']
  %s0 = inlined_call_operand.hbm [shape: f32[2,512], index: 0, kind: input, shape index: {}]
  %s1 = inlined_call_operand.hbm [shape: f32[512,512], index: 1, kind: input, shape index: {}]
  %s2 = inlined_call_operand.hbm [shape: f32[256,128], index: 2, kind: input, shape index: {}]
  %s3 = inlined_call_operand.hbm [shape: f32[2,128], index: 3, kind: output, shape index: {}]
  %s4 = sld [smem:[#allocation0]]
  $region34: #{tpu_custom_call.1} parent=0
    _
  %s6 = ssub.s32 1, %s4
  %s7 = scalar_select 0, %s6, %s4
  $region1: #{tpu_custom_call.1} parent=0
    #allocation2 [shape = 'u8[4096]{0}', space=vmem, size = 0x1000, scoped, tag = 'input window, operand 0, single buffered']
    #allocation3 [shape = 's32[1]{0}', space=sflag, size = 0x4, scoped, tag = 'scoped memory for tpu_custom_call.1']
    #allocation4 [shape = 's32[1]{0}', space=sflag, size = 0x4, scoped, tag = 'scoped memory for tpu_custom_call.1']
    #allocation5 [shape = 'u8[1048576]{0}', space=vmem, size = 0x100000, scoped, tag = 'input window, operand 1, single buffered']
    #allocation6 [shape = 's32[1]{0}', space=sflag, size = 0x4, scoped, tag = 'scoped memory for tpu_custom_call.1']
    #allocation7 [shape = 'u8[131072]{0}', space=vmem, size = 0x20000, scoped, tag = 'input window, operand 2, single buffered']
    #allocation8 [shape = 'u8[1024]{0}', space=vmem, size = 0x400, scoped, tag = 'output window, operand 0, single buffered']
    %8 = vsyncpa [#allocation3], 0
    %9 = vsyncpa [#allocation6], 0
    %10 = vsyncpa [#allocation4], 0
    // Predicated region
    $region2: #{tpu_custom_call.1} parent=1 // pred_check
      _
    $region3: #{tpu_custom_call.1} parent=1 // pred_check_branch
      %12 = sbr.rel (0) target = $region5
    $region4: #{tpu_custom_call.1} parent=1 // pred_region
      %14 = vsyncadd [#allocation3], 0
      %s16 = sshll.u32 %s0, 4
      %s17 = int_to_ptr.hbm [resolvable:$true] %s16
      %s18 = sshll.u32 [#allocation2], 4
      %s19 = int_to_ptr.vmem [resolvable:$true] %s18
      %21 = dma.hbm_to_vmem [thread:$0]  %s17, 128, %s19, [#allocation3]
    $region5: #{tpu_custom_call.1} parent=1 // pred_fallthru
      _
    // Predicated region
    $region6: #{tpu_custom_call.1} parent=1 // pred_check
      _
    $region7: #{tpu_custom_call.1} parent=1 // pred_check_branch
      %23 = sbr.rel (0) target = $region9
    $region8: #{tpu_custom_call.1} parent=1 // pred_region
      %25 = vsyncadd [#allocation6], 0
      %s26 = sshll.u32 %s1, 4
      %s27 = int_to_ptr.hbm [resolvable:$true] %s26
      %s28 = sshll.u32 [#allocation5], 4
      %s29 = int_to_ptr.vmem [resolvable:$true] %s28
      %34 = dma.hbm_to_vmem [thread:$0]  %s27, 32768, %s29, [#allocation6], 512, 512, 32
    $region9: #{tpu_custom_call.1} parent=1 // pred_fallthru
      _
    // Predicated region
    $region10: #{tpu_custom_call.1} parent=1 // pred_check
      _
    $region11: #{tpu_custom_call.1} parent=1 // pred_check_branch
      %36 = sbr.rel (0) target = $region13
    $region12: #{tpu_custom_call.1} parent=1 // pred_region
      %38 = vsyncadd [#allocation6], 0
      %s39 = sshll.u32 %s2, 4
      %s40 = int_to_ptr.hbm [resolvable:$true] %s39
      %s41 = sshll.u32 [#allocation7], 4
      %s42 = int_to_ptr.vmem [resolvable:$true] %s41
      %47 = dma.hbm_to_vmem [thread:$0]  %s40, 4096, %s42, [#allocation6], 128, 128, 8
    $region13: #{tpu_custom_call.1} parent=1 // pred_fallthru
      _
    // Predicated region
    $region14: #{tpu_custom_call.1} parent=1 // pred_check
      _
    $region15: #{tpu_custom_call.1} parent=1 // pred_check_branch
      %49 = sbr.rel (0) target = $region17
    $region16: #{tpu_custom_call.1} parent=1 // pred_region
      %51 = dma.done [#allocation3], 128
    $region17: #{tpu_custom_call.1} parent=1 // pred_fallthru
      _
    // Predicated region
    $region18: #{tpu_custom_call.1} parent=1 // pred_check
      _
    $region19: #{tpu_custom_call.1} parent=1 // pred_check_branch
      %53 = sbr.rel (0) target = $region21
    $region20: #{tpu_custom_call.1} parent=1 // pred_region
      %55 = dma.done [#allocation6], 32768
    $region21: #{tpu_custom_call.1} parent=1 // pred_fallthru
      _
    // Predicated region
    $region22: #{tpu_custom_call.1} parent=1 // pred_check
      _
    $region23: #{tpu_custom_call.1} parent=1 // pred_check_branch
      %57 = sbr.rel (0) target = $region25
    $region24: #{tpu_custom_call.1} parent=1 // pred_region
      %59 = dma.done [#allocation6], 4096
    $region25: #{tpu_custom_call.1} parent=1 // pred_fallthru
      _
    %v60 = vld [vmem:[#allocation2] sm:$0xff]
    %v61 = vld [vmem:[#allocation5] sm:$0xff]
    %v62 = vld [vmem:[#allocation5 + $0x8] sm:$0xff]
    %v63 = vld [vmem:[#allocation5 + $0x10] sm:$0xff]
    %v64 = vld [vmem:[#allocation5 + $0x18] sm:$0xff]
    %v65 = vld [vmem:[#allocation5 + $0x20] sm:$0xff]
    %v66 = vld [vmem:[#allocation5 + $0x28] sm:$0xff]
    %v67 = vld [vmem:[#allocation5 + $0x30] sm:$0xff]
    %v68 = vld [vmem:[#allocation5 + $0x38] sm:$0xff]
    %v69 = vld [vmem:[#allocation5 + $0x40] sm:$0xff]
    %v70 = vld [vmem:[#allocation5 + $0x48] sm:$0xff]
    %v71 = vld [vmem:[#allocation5 + $0x50] sm:$0xff]
    %v72 = vld [vmem:[#allocation5 + $0x58] sm:$0xff]
    %v73 = vld [vmem:[#allocation5 + $0x60] sm:$0xff]
    %v74 = vld [vmem:[#allocation5 + $0x68] sm:$0xff]
    %v75 = vld [vmem:[#allocation5 + $0x70] sm:$0xff]
    %v76 = vld [vmem:[#allocation5 + $0x78] sm:$0xff]
    %v77 = vld [vmem:[#allocation5 + $0x80] sm:$0xff]
    %v78 = vld [vmem:[#allocation5 + $0x88] sm:$0xff]
    %v79 = vld [vmem:[#allocation5 + $0x90] sm:$0xff]
    %v80 = vld [vmem:[#allocation5 + $0x98] sm:$0xff]
    %v81 = vld [vmem:[#allocation5 + $0xa0] sm:$0xff]
    %v82 = vld [vmem:[#allocation5 + $0xa8] sm:$0xff]
    %v83 = vld [vmem:[#allocation5 + $0xb0] sm:$0xff]
    %v84 = vld [vmem:[#allocation5 + $0xb8] sm:$0xff]
    %v85 = vld [vmem:[#allocation5 + $0xc0] sm:$0xff]
    %v86 = vld [vmem:[#allocation5 + $0xc8] sm:$0xff]
    %v87 = vld [vmem:[#allocation5 + $0xd0] sm:$0xff]
    %v88 = vld [vmem:[#allocation5 + $0xd8] sm:$0xff]
    %v89 = vld [vmem:[#allocation5 + $0xe0] sm:$0xff]
    %v90 = vld [vmem:[#allocation5 + $0xe8] sm:$0xff]
    %v91 = vld [vmem:[#allocation5 + $0xf0] sm:$0xff]
    %v92 = vld [vmem:[#allocation5 + $0xf8] sm:$0xff]
    %v93 = vld [vmem:[#allocation5 + $0x100] sm:$0xff]
    %v94 = vld [vmem:[#allocation5 + $0x108] sm:$0xff]
    %v95 = vld [vmem:[#allocation5 + $0x110] sm:$0xff]
    %v96 = vld [vmem:[#allocation5 + $0x118] sm:$0xff]
    %v97 = vld [vmem:[#allocation5 + $0x120] sm:$0xff]
    %v98 = vld [vmem:[#allocation5 + $0x128] sm:$0xff]
    %v99 = vld [vmem:[#allocation5 + $0x130] sm:$0xff]
    %v100 = vld [vmem:[#allocation5 + $0x138] sm:$0xff]
    %v101 = vld [vmem:[#allocation5 + $0x140] sm:$0xff]
    %v102 = vld [vmem:[#allocation5 + $0x148] sm:$0xff]
    %v103 = vld [vmem:[#allocation5 + $0x150] sm:$0xff]
    %v104 = vld [vmem:[#allocation5 + $0x158] sm:$0xff]
    %v105 = vld [vmem:[#allocation5 + $0x160] sm:$0xff]
    %v106 = vld [vmem:[#allocation5 + $0x168] sm:$0xff]
    %v107 = vld [vmem:[#allocation5 + $0x170] sm:$0xff]
    %v108 = vld [vmem:[#allocation5 + $0x178] sm:$0xff]
    %v109 = vld [vmem:[#allocation5 + $0x180] sm:$0xff]
    %v110 = vld [vmem:[#allocation5 + $0x188] sm:$0xff]
    %v111 = vld [vmem:[#allocation5 + $0x190] sm:$0xff]
    %v112 = vld [vmem:[#allocation5 + $0x198] sm:$0xff]
    %v113 = vld [vmem:[#allocation5 + $0x1a0] sm:$0xff]
    %v114 = vld [vmem:[#allocation5 + $0x1a8] sm:$0xff]
    %v115 = vld [vmem:[#allocation5 + $0x1b0] sm:$0xff]
    %v116 = vld [vmem:[#allocation5 + $0x1b8] sm:$0xff]
    %v117 = vld [vmem:[#allocation5 + $0x1c0] sm:$0xff]
    %v118 = vld [vmem:[#allocation5 + $0x1c8] sm:$0xff]
    %v119 = vld [vmem:[#allocation5 + $0x1d0] sm:$0xff]
    %v120 = vld [vmem:[#allocation5 + $0x1d8] sm:$0xff]
    %v121 = vld [vmem:[#allocation5 + $0x1e0] sm:$0xff]
    %v122 = vld [vmem:[#allocation5 + $0x1e8] sm:$0xff]
    %v123 = vld [vmem:[#allocation5 + $0x1f0] sm:$0xff]
    %v124 = vld [vmem:[#allocation5 + $0x1f8] sm:$0xff]
    %v125 = vld [vmem:[#allocation5 + $0x200] sm:$0xff]
    %v126 = vld [vmem:[#allocation5 + $0x208] sm:$0xff]
    %v127 = vld [vmem:[#allocation5 + $0x210] sm:$0xff]
    %v128 = vld [vmem:[#allocation5 + $0x218] sm:$0xff]
    %v129 = vld [vmem:[#allocation5 + $0x220] sm:$0xff]
    %v130 = vld [vmem:[#allocation5 + $0x228] sm:$0xff]
    %v131 = vld [vmem:[#allocation5 + $0x230] sm:$0xff]
    %v132 = vld [vmem:[#allocation5 + $0x238] sm:$0xff]
    %v133 = vld [vmem:[#allocation5 + $0x240] sm:$0xff]
    %v134 = vld [vmem:[#allocation5 + $0x248] sm:$0xff]
    %v135 = vld [vmem:[#allocation5 + $0x250] sm:$0xff]
    %v136 = vld [vmem:[#allocation5 + $0x258] sm:$0xff]
    %v137 = vld [vmem:[#allocation5 + $0x260] sm:$0xff]
    %v138 = vld [vmem:[#allocation5 + $0x268] sm:$0xff]
    %v139 = vld [vmem:[#allocation5 + $0x270] sm:$0xff]
    %v140 = vld [vmem:[#allocation5 + $0x278] sm:$0xff]
    %v141 = vld [vmem:[#allocation5 + $0x280] sm:$0xff]
    %v142 = vld [vmem:[#allocation5 + $0x288] sm:$0xff]
    %v143 = vld [vmem:[#allocation5 + $0x290] sm:$0xff]
    %v144 = vld [vmem:[#allocation5 + $0x298] sm:$0xff]
    %v145 = vld [vmem:[#allocation5 + $0x2a0] sm:$0xff]
    %v146 = vld [vmem:[#allocation5 + $0x2a8] sm:$0xff]
    %v147 = vld [vmem:[#allocation5 + $0x2b0] sm:$0xff]
    %v148 = vld [vmem:[#allocation5 + $0x2b8] sm:$0xff]
    %v149 = vld [vmem:[#allocation5 + $0x2c0] sm:$0xff]
    %v150 = vld [vmem:[#allocation5 + $0x2c8] sm:$0xff]
    %v151 = vld [vmem:[#allocation5 + $0x2d0] sm:$0xff]
    %v152 = vld [vmem:[#allocation5 + $0x2d8] sm:$0xff]
    %v153 = vld [vmem:[#allocation5 + $0x2e0] sm:$0xff]
    %v154 = vld [vmem:[#allocation5 + $0x2e8] sm:$0xff]
    %v155 = vld [vmem:[#allocation5 + $0x2f0] sm:$0xff]
    %v156 = vld [vmem:[#allocation5 + $0x2f8] sm:$0xff]
    %v157 = vld [vmem:[#allocation5 + $0x300] sm:$0xff]
    %v158 = vld [vmem:[#allocation5 + $0x308] sm:$0xff]
    %v159 = vld [vmem:[#allocation5 + $0x310] sm:$0xff]
    %v160 = vld [vmem:[#allocation5 + $0x318] sm:$0xff]
    %v161 = vld [vmem:[#allocation5 + $0x320] sm:$0xff]
    %v162 = vld [vmem:[#allocation5 + $0x328] sm:$0xff]
    %v163 = vld [vmem:[#allocation5 + $0x330] sm:$0xff]
    %v164 = vld [vmem:[#allocation5 + $0x338] sm:$0xff]
    %v165 = vld [vmem:[#allocation5 + $0x340] sm:$0xff]
    %v166 = vld [vmem:[#allocation5 + $0x348] sm:$0xff]
    %v167 = vld [vmem:[#allocation5 + $0x350] sm:$0xff]
    %v168 = vld [vmem:[#allocation5 + $0x358] sm:$0xff]
    %v169 = vld [vmem:[#allocation5 + $0x360] sm:$0xff]
    %v170 = vld [vmem:[#allocation5 + $0x368] sm:$0xff]
    %v171 = vld [vmem:[#allocation5 + $0x370] sm:$0xff]
    %v172 = vld [vmem:[#allocation5 + $0x378] sm:$0xff]
    %v173 = vld [vmem:[#allocation5 + $0x380] sm:$0xff]
    %v174 = vld [vmem:[#allocation5 + $0x388] sm:$0xff]
    %v175 = vld [vmem:[#allocation5 + $0x390] sm:$0xff]
    %v176 = vld [vmem:[#allocation5 + $0x398] sm:$0xff]
    %v177 = vld [vmem:[#allocation5 + $0x3a0] sm:$0xff]
    %v178 = vld [vmem:[#allocation5 + $0x3a8] sm:$0xff]
    %v179 = vld [vmem:[#allocation5 + $0x3b0] sm:$0xff]
    %v180 = vld [vmem:[#allocation5 + $0x3b8] sm:$0xff]
    %v181 = vld [vmem:[#allocation5 + $0x3c0] sm:$0xff]
    %v182 = vld [vmem:[#allocation5 + $0x3c8] sm:$0xff]
    %v183 = vld [vmem:[#allocation5 + $0x3d0] sm:$0xff]
    %v184 = vld [vmem:[#allocation5 + $0x3d8] sm:$0xff]
    %v185 = vld [vmem:[#allocation5 + $0x3e0] sm:$0xff]
    %v186 = vld [vmem:[#allocation5 + $0x3e8] sm:$0xff]
    %v187 = vld [vmem:[#allocation5 + $0x3f0] sm:$0xff]
    %v188 = vld [vmem:[#allocation5 + $0x3f8] sm:$0xff]
    %v189 = vld [vmem:[#allocation5 + $0x400] sm:$0xff]
    %v190 = vld [vmem:[#allocation5 + $0x408] sm:$0xff]
    %v191 = vld [vmem:[#allocation5 + $0x410] sm:$0xff]
    %v192 = vld [vmem:[#allocation5 + $0x418] sm:$0xff]
    %v193 = vld [vmem:[#allocation5 + $0x420] sm:$0xff]
    %v194 = vld [vmem:[#allocation5 + $0x428] sm:$0xff]
    %v195 = vld [vmem:[#allocation5 + $0x430] sm:$0xff]
    %v196 = vld [vmem:[#allocation5 + $0x438] sm:$0xff]
    %v197 = vld [vmem:[#allocation5 + $0x440] sm:$0xff]
    %v198 = vld [vmem:[#allocation5 + $0x448] sm:$0xff]
    %v199 = vld [vmem:[#allocation5 + $0x450] sm:$0xff]
    %v200 = vld [vmem:[#allocation5 + $0x458] sm:$0xff]
    %v201 = vld [vmem:[#allocation5 + $0x460] sm:$0xff]
    %v202 = vld [vmem:[#allocation5 + $0x468] sm:$0xff]
    %v203 = vld [vmem:[#allocation5 + $0x470] sm:$0xff]
    %v204 = vld [vmem:[#allocation5 + $0x478] sm:$0xff]
    %v205 = vld [vmem:[#allocation5 + $0x480] sm:$0xff]
    %v206 = vld [vmem:[#allocation5 + $0x488] sm:$0xff]
    %v207 = vld [vmem:[#allocation5 + $0x490] sm:$0xff]
    %v208 = vld [vmem:[#allocation5 + $0x498] sm:$0xff]
    %v209 = vld [vmem:[#allocation5 + $0x4a0] sm:$0xff]
    %v210 = vld [vmem:[#allocation5 + $0x4a8] sm:$0xff]
    %v211 = vld [vmem:[#allocation5 + $0x4b0] sm:$0xff]
    %v212 = vld [vmem:[#allocation5 + $0x4b8] sm:$0xff]
    %v213 = vld [vmem:[#allocation5 + $0x4c0] sm:$0xff]
    %v214 = vld [vmem:[#allocation5 + $0x4c8] sm:$0xff]
    %v215 = vld [vmem:[#allocation5 + $0x4d0] sm:$0xff]
    %v216 = vld [vmem:[#allocation5 + $0x4d8] sm:$0xff]
    %v217 = vld [vmem:[#allocation5 + $0x4e0] sm:$0xff]
    %v218 = vld [vmem:[#allocation5 + $0x4e8] sm:$0xff]
    %v219 = vld [vmem:[#allocation5 + $0x4f0] sm:$0xff]
    %v220 = vld [vmem:[#allocation5 + $0x4f8] sm:$0xff]
    %v221 = vld [vmem:[#allocation5 + $0x500] sm:$0xff]
    %v222 = vld [vmem:[#allocation5 + $0x508] sm:$0xff]
    %v223 = vld [vmem:[#allocation5 + $0x510] sm:$0xff]
    %v224 = vld [vmem:[#allocation5 + $0x518] sm:$0xff]
    %v225 = vld [vmem:[#allocation5 + $0x520] sm:$0xff]
    %v226 = vld [vmem:[#allocation5 + $0x528] sm:$0xff]
    %v227 = vld [vmem:[#allocation5 + $0x530] sm:$0xff]
    %v228 = vld [vmem:[#allocation5 + $0x538] sm:$0xff]
    %v229 = vld [vmem:[#allocation5 + $0x540] sm:$0xff]
    %v230 = vld [vmem:[#allocation5 + $0x548] sm:$0xff]
    %v231 = vld [vmem:[#allocation5 + $0x550] sm:$0xff]
    %v232 = vld [vmem:[#allocation5 + $0x558] sm:$0xff]
    %v233 = vld [vmem:[#allocation5 + $0x560] sm:$0xff]
    %v234 = vld [vmem:[#allocation5 + $0x568] sm:$0xff]
    %v235 = vld [vmem:[#allocation5 + $0x570] sm:$0xff]
    %v236 = vld [vmem:[#allocation5 + $0x578] sm:$0xff]
    %v237 = vld [vmem:[#allocation5 + $0x580] sm:$0xff]
    %v238 = vld [vmem:[#allocation5 + $0x588] sm:$0xff]
    %v239 = vld [vmem:[#allocation5 + $0x590] sm:$0xff]
    %v240 = vld [vmem:[#allocation5 + $0x598] sm:$0xff]
    %v241 = vld [vmem:[#allocation5 + $0x5a0] sm:$0xff]
    %v242 = vld [vmem:[#allocation5 + $0x5a8] sm:$0xff]
    %v243 = vld [vmem:[#allocation5 + $0x5b0] sm:$0xff]
    %v244 = vld [vmem:[#allocation5 + $0x5b8] sm:$0xff]
    %v245 = vld [vmem:[#allocation5 + $0x5c0] sm:$0xff]
    %v246 = vld [vmem:[#allocation5 + $0x5c8] sm:$0xff]
    %v247 = vld [vmem:[#allocation5 + $0x5d0] sm:$0xff]
    %v248 = vld [vmem:[#allocation5 + $0x5d8] sm:$0xff]
    %v249 = vld [vmem:[#allocation5 + $0x5e0] sm:$0xff]
    %v250 = vld [vmem:[#allocation5 + $0x5e8] sm:$0xff]
    %v251 = vld [vmem:[#allocation5 + $0x5f0] sm:$0xff]
    %v252 = vld [vmem:[#allocation5 + $0x5f8] sm:$0xff]
    %v253 = vld [vmem:[#allocation5 + $0x600] sm:$0xff]
    %v254 = vld [vmem:[#allocation5 + $0x608] sm:$0xff]
    %v255 = vld [vmem:[#allocation5 + $0x610] sm:$0xff]
    %v256 = vld [vmem:[#allocation5 + $0x618] sm:$0xff]
    %v257 = vld [vmem:[#allocation5 + $0x620] sm:$0xff]
    %v258 = vld [vmem:[#allocation5 + $0x628] sm:$0xff]
    %v259 = vld [vmem:[#allocation5 + $0x630] sm:$0xff]
    %v260 = vld [vmem:[#allocation5 + $0x638] sm:$0xff]
    %v261 = vld [vmem:[#allocation5 + $0x640] sm:$0xff]
    %v262 = vld [vmem:[#allocation5 + $0x648] sm:$0xff]
    %v263 = vld [vmem:[#allocation5 + $0x650] sm:$0xff]
    %v264 = vld [vmem:[#allocation5 + $0x658] sm:$0xff]
    %v265 = vld [vmem:[#allocation5 + $0x660] sm:$0xff]
    %v266 = vld [vmem:[#allocation5 + $0x668] sm:$0xff]
    %v267 = vld [vmem:[#allocation5 + $0x670] sm:$0xff]
    %v268 = vld [vmem:[#allocation5 + $0x678] sm:$0xff]
    %v269 = vld [vmem:[#allocation5 + $0x680] sm:$0xff]
    %v270 = vld [vmem:[#allocation5 + $0x688] sm:$0xff]
    %v271 = vld [vmem:[#allocation5 + $0x690] sm:$0xff]
    %v272 = vld [vmem:[#allocation5 + $0x698] sm:$0xff]
    %v273 = vld [vmem:[#allocation5 + $0x6a0] sm:$0xff]
    %v274 = vld [vmem:[#allocation5 + $0x6a8] sm:$0xff]
    %v275 = vld [vmem:[#allocation5 + $0x6b0] sm:$0xff]
    %v276 = vld [vmem:[#allocation5 + $0x6b8] sm:$0xff]
    %v277 = vld [vmem:[#allocation5 + $0x6c0] sm:$0xff]
    %v278 = vld [vmem:[#allocation5 + $0x6c8] sm:$0xff]
    %v279 = vld [vmem:[#allocation5 + $0x6d0] sm:$0xff]
    %v280 = vld [vmem:[#allocation5 + $0x6d8] sm:$0xff]
    %v281 = vld [vmem:[#allocation5 + $0x6e0] sm:$0xff]
    %v282 = vld [vmem:[#allocation5 + $0x6e8] sm:$0xff]
    %v283 = vld [vmem:[#allocation5 + $0x6f0] sm:$0xff]
    %v284 = vld [vmem:[#allocation5 + $0x6f8] sm:$0xff]
    %v285 = vld [vmem:[#allocation5 + $0x700] sm:$0xff]
    %v286 = vld [vmem:[#allocation5 + $0x708] sm:$0xff]
    %v287 = vld [vmem:[#allocation5 + $0x710] sm:$0xff]
    %v288 = vld [vmem:[#allocation5 + $0x718] sm:$0xff]
    %v289 = vld [vmem:[#allocation5 + $0x720] sm:$0xff]
    %v290 = vld [vmem:[#allocation5 + $0x728] sm:$0xff]
    %v291 = vld [vmem:[#allocation5 + $0x730] sm:$0xff]
    %v292 = vld [vmem:[#allocation5 + $0x738] sm:$0xff]
    %v293 = vld [vmem:[#allocation5 + $0x740] sm:$0xff]
    %v294 = vld [vmem:[#allocation5 + $0x748] sm:$0xff]
    %v295 = vld [vmem:[#allocation5 + $0x750] sm:$0xff]
    %v296 = vld [vmem:[#allocation5 + $0x758] sm:$0xff]
    %v297 = vld [vmem:[#allocation5 + $0x760] sm:$0xff]
    %v298 = vld [vmem:[#allocation5 + $0x768] sm:$0xff]
    %v299 = vld [vmem:[#allocation5 + $0x770] sm:$0xff]
    %v300 = vld [vmem:[#allocation5 + $0x778] sm:$0xff]
    %v301 = vld [vmem:[#allocation5 + $0x780] sm:$0xff]
    %v302 = vld [vmem:[#allocation5 + $0x788] sm:$0xff]
    %v303 = vld [vmem:[#allocation5 + $0x790] sm:$0xff]
    %v304 = vld [vmem:[#allocation5 + $0x798] sm:$0xff]
    %v305 = vld [vmem:[#allocation5 + $0x7a0] sm:$0xff]
    %v306 = vld [vmem:[#allocation5 + $0x7a8] sm:$0xff]
    %v307 = vld [vmem:[#allocation5 + $0x7b0] sm:$0xff]
    %v308 = vld [vmem:[#allocation5 + $0x7b8] sm:$0xff]
    %v309 = vld [vmem:[#allocation5 + $0x7c0] sm:$0xff]
    %v310 = vld [vmem:[#allocation5 + $0x7c8] sm:$0xff]
    %v311 = vld [vmem:[#allocation5 + $0x7d0] sm:$0xff]
    %v312 = vld [vmem:[#allocation5 + $0x7d8] sm:$0xff]
    %v313 = vld [vmem:[#allocation5 + $0x7e0] sm:$0xff]
    %v314 = vld [vmem:[#allocation5 + $0x7e8] sm:$0xff]
    %v315 = vld [vmem:[#allocation5 + $0x7f0] sm:$0xff]
    %v316 = vld [vmem:[#allocation5 + $0x7f8] sm:$0xff]
    %318 = vst [vmem:[#allocation1] ss:$4 sm:$0xff] %v60
    %v319 = vld.sshfl [vmem:[#allocation1] sm:$0xff pattern:$0x73625140]
    %v320 = vld.sshfl [vmem:[#allocation1 + $0x8] sm:$0xff pattern:$0x73625140]
    %v321 = vld.sshfl [vmem:[#allocation1 + $0x10] sm:$0xff pattern:$0x73625140]
    %v322 = vld.sshfl [vmem:[#allocation1 + $0x18] sm:$0xff pattern:$0x73625140]
    %327 = vmatpush.msra.mxu0 %v121
    %328 = vmatpush.msra.mxu0 %v117
    %329 = vmatpush.msra.mxu0 %v113
    %330 = vmatpush.msra.mxu0 %v109
    %331 = vmatpush.msra.mxu0 %v105
    %332 = vmatpush.msra.mxu0 %v101
    %333 = vmatpush.msra.mxu0 %v97
    %334 = vmatpush.msra.mxu0 %v93
    %335 = vmatpush.msra.mxu0 %v89
    %336 = vmatpush.msra.mxu0 %v85
    %337 = vmatpush.msra.mxu0 %v81
    %338 = vmatpush.msra.mxu0 %v77
    %339 = vmatpush.msra.mxu0 %v73
    %340 = vmatpush.msra.mxu0 %v69
    %341 = vmatpush.msra.mxu0 %v65
    %342 = vmatpush.msra.mxu0 %v61
    %343 = vmatmul.f32.gmra.mxu0 %v319
    %v344 = vpop.f32.mrf.mxu0
    %v345 = vadd.f32 0.0, %v344
    %346 = vdwg.mxu0
    %347 = vmatpush.msra.mxu0 %v185
    %348 = vmatpush.msra.mxu0 %v181
    %349 = vmatpush.msra.mxu0 %v177
    %350 = vmatpush.msra.mxu0 %v173
    %351 = vmatpush.msra.mxu0 %v169
    %352 = vmatpush.msra.mxu0 %v165
    %353 = vmatpush.msra.mxu0 %v161
    %354 = vmatpush.msra.mxu0 %v157
    %355 = vmatpush.msra.mxu0 %v153
    %356 = vmatpush.msra.mxu0 %v149
    %357 = vmatpush.msra.mxu0 %v145
    %358 = vmatpush.msra.mxu0 %v141
    %359 = vmatpush.msra.mxu0 %v137
    %360 = vmatpush.msra.mxu0 %v133
    %361 = vmatpush.msra.mxu0 %v129
    %362 = vmatpush.msra.mxu0 %v125
    %363 = vmatmul.f32.gmra.mxu0 %v320
    %v364 = vpop.f32.mrf.mxu0
    %v365 = vadd.f32 %v345, %v364
    %366 = vdwg.mxu0
    %367 = vmatpush.msra.mxu0 %v249
    %368 = vmatpush.msra.mxu0 %v245
    %369 = vmatpush.msra.mxu0 %v241
    %370 = vmatpush.msra.mxu0 %v237
    %371 = vmatpush.msra.mxu0 %v233
    %372 = vmatpush.msra.mxu0 %v229
    %373 = vmatpush.msra.mxu0 %v225
    %374 = vmatpush.msra.mxu0 %v221
    %375 = vmatpush.msra.mxu0 %v217
    %376 = vmatpush.msra.mxu0 %v213
    %377 = vmatpush.msra.mxu0 %v209
    %378 = vmatpush.msra.mxu0 %v205
    %379 = vmatpush.msra.mxu0 %v201
    %380 = vmatpush.msra.mxu0 %v197
    %381 = vmatpush.msra.mxu0 %v193
    %382 = vmatpush.msra.mxu0 %v189
    %383 = vmatmul.f32.gmra.mxu0 %v321
    %v384 = vpop.f32.mrf.mxu0
    %v385 = vadd.f32 %v365, %v384
    %386 = vdwg.mxu0
    %387 = vmatpush.msra.mxu0 %v313
    %388 = vmatpush.msra.mxu0 %v309
    %389 = vmatpush.msra.mxu0 %v305
    %390 = vmatpush.msra.mxu0 %v301
    %391 = vmatpush.msra.mxu0 %v297
    %392 = vmatpush.msra.mxu0 %v293
    %393 = vmatpush.msra.mxu0 %v289
    %394 = vmatpush.msra.mxu0 %v285
    %395 = vmatpush.msra.mxu0 %v281
    %396 = vmatpush.msra.mxu0 %v277
    %397 = vmatpush.msra.mxu0 %v273
    %398 = vmatpush.msra.mxu0 %v269
    %399 = vmatpush.msra.mxu0 %v265
    %400 = vmatpush.msra.mxu0 %v261
    %401 = vmatpush.msra.mxu0 %v257
    %402 = vmatpush.msra.mxu0 %v253
    %403 = vmatmul.f32.gmra.mxu0 %v322
    %v404 = vpop.f32.mrf.mxu0
    %v405 = vadd.f32 %v385, %v404
    %406 = vdwg.mxu0
    %407 = vmatpush.msra.mxu0 %v122
    %408 = vmatpush.msra.mxu0 %v118
    %409 = vmatpush.msra.mxu0 %v114
    %410 = vmatpush.msra.mxu0 %v110
    %411 = vmatpush.msra.mxu0 %v106
    %412 = vmatpush.msra.mxu0 %v102
    %413 = vmatpush.msra.mxu0 %v98
    %414 = vmatpush.msra.mxu0 %v94
    %415 = vmatpush.msra.mxu0 %v90
    %416 = vmatpush.msra.mxu0 %v86
    %417 = vmatpush.msra.mxu0 %v82
    %418 = vmatpush.msra.mxu0 %v78
    %419 = vmatpush.msra.mxu0 %v74
    %420 = vmatpush.msra.mxu0 %v70
    %421 = vmatpush.msra.mxu0 %v66
    %422 = vmatpush.msra.mxu0 %v62
    %423 = vmatmul.f32.gmra.mxu0 %v319
    %v424 = vpop.f32.mrf.mxu0
    %v425 = vadd.f32 0.0, %v424
    %426 = vdwg.mxu0
    %427 = vmatpush.msra.mxu0 %v186
    %428 = vmatpush.msra.mxu0 %v182
    %429 = vmatpush.msra.mxu0 %v178
    %430 = vmatpush.msra.mxu0 %v174
    %431 = vmatpush.msra.mxu0 %v170
    %432 = vmatpush.msra.mxu0 %v166
    %433 = vmatpush.msra.mxu0 %v162
    %434 = vmatpush.msra.mxu0 %v158
    %435 = vmatpush.msra.mxu0 %v154
    %436 = vmatpush.msra.mxu0 %v150
    %437 = vmatpush.msra.mxu0 %v146
    %438 = vmatpush.msra.mxu0 %v142
    %439 = vmatpush.msra.mxu0 %v138
    %440 = vmatpush.msra.mxu0 %v134
    %441 = vmatpush.msra.mxu0 %v130
    %442 = vmatpush.msra.mxu0 %v126
    %443 = vmatmul.f32.gmra.mxu0 %v320
    %v444 = vpop.f32.mrf.mxu0
    %v445 = vadd.f32 %v425, %v444
    %446 = vdwg.mxu0
    %447 = vmatpush.msra.mxu0 %v250
    %448 = vmatpush.msra.mxu0 %v246
    %449 = vmatpush.msra.mxu0 %v242
    %450 = vmatpush.msra.mxu0 %v238
    %451 = vmatpush.msra.mxu0 %v234
    %452 = vmatpush.msra.mxu0 %v230
    %453 = vmatpush.msra.mxu0 %v226
    %454 = vmatpush.msra.mxu0 %v222
    %455 = vmatpush.msra.mxu0 %v218
    %456 = vmatpush.msra.mxu0 %v214
    %457 = vmatpush.msra.mxu0 %v210
    %458 = vmatpush.msra.mxu0 %v206
    %459 = vmatpush.msra.mxu0 %v202
    %460 = vmatpush.msra.mxu0 %v198
    %461 = vmatpush.msra.mxu0 %v194
    %462 = vmatpush.msra.mxu0 %v190
    %463 = vmatmul.f32.gmra.mxu0 %v321
    %v464 = vpop.f32.mrf.mxu0
    %v465 = vadd.f32 %v445, %v464
    %466 = vdwg.mxu0
    %467 = vmatpush.msra.mxu0 %v314
    %468 = vmatpush.msra.mxu0 %v310
    %469 = vmatpush.msra.mxu0 %v306
    %470 = vmatpush.msra.mxu0 %v302
    %471 = vmatpush.msra.mxu0 %v298
    %472 = vmatpush.msra.mxu0 %v294
    %473 = vmatpush.msra.mxu0 %v290
    %474 = vmatpush.msra.mxu0 %v286
    %475 = vmatpush.msra.mxu0 %v282
    %476 = vmatpush.msra.mxu0 %v278
    %477 = vmatpush.msra.mxu0 %v274
    %478 = vmatpush.msra.mxu0 %v270
    %479 = vmatpush.msra.mxu0 %v266
    %480 = vmatpush.msra.mxu0 %v262
    %481 = vmatpush.msra.mxu0 %v258
    %482 = vmatpush.msra.mxu0 %v254
    %483 = vmatmul.f32.gmra.mxu0 %v322
    %v484 = vpop.f32.mrf.mxu0
    %v485 = vadd.f32 %v465, %v484
    %486 = vdwg.mxu0
    %487 = vmatpush.msra.mxu0 %v123
    %488 = vmatpush.msra.mxu0 %v119
    %489 = vmatpush.msra.mxu0 %v115
    %490 = vmatpush.msra.mxu0 %v111
    %491 = vmatpush.msra.mxu0 %v107
    %492 = vmatpush.msra.mxu0 %v103
    %493 = vmatpush.msra.mxu0 %v99
    %494 = vmatpush.msra.mxu0 %v95
    %495 = vmatpush.msra.mxu0 %v91
    %496 = vmatpush.msra.mxu0 %v87
    %497 = vmatpush.msra.mxu0 %v83
    %498 = vmatpush.msra.mxu0 %v79
    %499 = vmatpush.msra.mxu0 %v75
    %500 = vmatpush.msra.mxu0 %v71
    %501 = vmatpush.msra.mxu0 %v67
    %502 = vmatpush.msra.mxu0 %v63
    %503 = vmatmul.f32.gmra.mxu0 %v319
    %v504 = vpop.f32.mrf.mxu0
    %v505 = vadd.f32 0.0, %v504
    %506 = vdwg.mxu0
    %507 = vmatpush.msra.mxu0 %v187
    %508 = vmatpush.msra.mxu0 %v183
    %509 = vmatpush.msra.mxu0 %v179
    %510 = vmatpush.msra.mxu0 %v175
    %511 = vmatpush.msra.mxu0 %v171
    %512 = vmatpush.msra.mxu0 %v167
    %513 = vmatpush.msra.mxu0 %v163
    %514 = vmatpush.msra.mxu0 %v159
    %515 = vmatpush.msra.mxu0 %v155
    %516 = vmatpush.msra.mxu0 %v151
    %517 = vmatpush.msra.mxu0 %v147
    %518 = vmatpush.msra.mxu0 %v143
    %519 = vmatpush.msra.mxu0 %v139
    %520 = vmatpush.msra.mxu0 %v135
    %521 = vmatpush.msra.mxu0 %v131
    %522 = vmatpush.msra.mxu0 %v127
    %523 = vmatmul.f32.gmra.mxu0 %v320
    %v524 = vpop.f32.mrf.mxu0
    %v525 = vadd.f32 %v505, %v524
    %526 = vdwg.mxu0
    %527 = vmatpush.msra.mxu0 %v251
    %528 = vmatpush.msra.mxu0 %v247
    %529 = vmatpush.msra.mxu0 %v243
    %530 = vmatpush.msra.mxu0 %v239
    %531 = vmatpush.msra.mxu0 %v235
    %532 = vmatpush.msra.mxu0 %v231
    %533 = vmatpush.msra.mxu0 %v227
    %534 = vmatpush.msra.mxu0 %v223
    %535 = vmatpush.msra.mxu0 %v219
    %536 = vmatpush.msra.mxu0 %v215
    %537 = vmatpush.msra.mxu0 %v211
    %538 = vmatpush.msra.mxu0 %v207
    %539 = vmatpush.msra.mxu0 %v203
    %540 = vmatpush.msra.mxu0 %v199
    %541 = vmatpush.msra.mxu0 %v195
    %542 = vmatpush.msra.mxu0 %v191
    %543 = vmatmul.f32.gmra.mxu0 %v321
    %v544 = vpop.f32.mrf.mxu0
    %v545 = vadd.f32 %v525, %v544
    %546 = vdwg.mxu0
    %547 = vmatpush.msra.mxu0 %v315
    %548 = vmatpush.msra.mxu0 %v311
    %549 = vmatpush.msra.mxu0 %v307
    %550 = vmatpush.msra.mxu0 %v303
    %551 = vmatpush.msra.mxu0 %v299
    %552 = vmatpush.msra.mxu0 %v295
    %553 = vmatpush.msra.mxu0 %v291
    %554 = vmatpush.msra.mxu0 %v287
    %555 = vmatpush.msra.mxu0 %v283
    %556 = vmatpush.msra.mxu0 %v279
    %557 = vmatpush.msra.mxu0 %v275
    %558 = vmatpush.msra.mxu0 %v271
    %559 = vmatpush.msra.mxu0 %v267
    %560 = vmatpush.msra.mxu0 %v263
    %561 = vmatpush.msra.mxu0 %v259
    %562 = vmatpush.msra.mxu0 %v255
    %563 = vmatmul.f32.gmra.mxu0 %v322
    %v564 = vpop.f32.mrf.mxu0
    %v565 = vadd.f32 %v545, %v564
    %566 = vdwg.mxu0
    %567 = vmatpush.msra.mxu0 %v124
    %568 = vmatpush.msra.mxu0 %v120
    %569 = vmatpush.msra.mxu0 %v116
    %570 = vmatpush.msra.mxu0 %v112
    %571 = vmatpush.msra.mxu0 %v108
    %572 = vmatpush.msra.mxu0 %v104
    %573 = vmatpush.msra.mxu0 %v100
    %574 = vmatpush.msra.mxu0 %v96
    %575 = vmatpush.msra.mxu0 %v92
    %576 = vmatpush.msra.mxu0 %v88
    %577 = vmatpush.msra.mxu0 %v84
    %578 = vmatpush.msra.mxu0 %v80
    %579 = vmatpush.msra.mxu0 %v76
    %580 = vmatpush.msra.mxu0 %v72
    %581 = vmatpush.msra.mxu0 %v68
    %582 = vmatpush.msra.mxu0 %v64
    %583 = vmatmul.f32.gmra.mxu0 %v319
    %v584 = vpop.f32.mrf.mxu0
    %v585 = vadd.f32 0.0, %v584
    %586 = vdwg.mxu0
    %587 = vmatpush.msra.mxu0 %v188
    %588 = vmatpush.msra.mxu0 %v184
    %589 = vmatpush.msra.mxu0 %v180
    %590 = vmatpush.msra.mxu0 %v176
    %591 = vmatpush.msra.mxu0 %v172
    %592 = vmatpush.msra.mxu0 %v168
    %593 = vmatpush.msra.mxu0 %v164
    %594 = vmatpush.msra.mxu0 %v160
    %595 = vmatpush.msra.mxu0 %v156
    %596 = vmatpush.msra.mxu0 %v152
    %597 = vmatpush.msra.mxu0 %v148
    %598 = vmatpush.msra.mxu0 %v144
    %599 = vmatpush.msra.mxu0 %v140
    %600 = vmatpush.msra.mxu0 %v136
    %601 = vmatpush.msra.mxu0 %v132
    %602 = vmatpush.msra.mxu0 %v128
    %603 = vmatmul.f32.gmra.mxu0 %v320
    %v604 = vpop.f32.mrf.mxu0
    %v605 = vadd.f32 %v585, %v604
    %606 = vdwg.mxu0
    %607 = vmatpush.msra.mxu0 %v252
    %608 = vmatpush.msra.mxu0 %v248
    %609 = vmatpush.msra.mxu0 %v244
    %610 = vmatpush.msra.mxu0 %v240
    %611 = vmatpush.msra.mxu0 %v236
    %612 = vmatpush.msra.mxu0 %v232
    %613 = vmatpush.msra.mxu0 %v228
    %614 = vmatpush.msra.mxu0 %v224
    %615 = vmatpush.msra.mxu0 %v220
    %616 = vmatpush.msra.mxu0 %v216
    %617 = vmatpush.msra.mxu0 %v212
    %618 = vmatpush.msra.mxu0 %v208
    %619 = vmatpush.msra.mxu0 %v204
    %620 = vmatpush.msra.mxu0 %v200
    %621 = vmatpush.msra.mxu0 %v196
    %622 = vmatpush.msra.mxu0 %v192
    %623 = vmatmul.f32.gmra.mxu0 %v321
    %v624 = vpop.f32.mrf.mxu0
    %v625 = vadd.f32 %v605, %v624
    %626 = vdwg.mxu0
    %627 = vmatpush.msra.mxu0 %v316
    %628 = vmatpush.msra.mxu0 %v312
    %629 = vmatpush.msra.mxu0 %v308
    %630 = vmatpush.msra.mxu0 %v304
    %631 = vmatpush.msra.mxu0 %v300
    %632 = vmatpush.msra.mxu0 %v296
    %633 = vmatpush.msra.mxu0 %v292
    %634 = vmatpush.msra.mxu0 %v288
    %635 = vmatpush.msra.mxu0 %v284
    %636 = vmatpush.msra.mxu0 %v280
    %637 = vmatpush.msra.mxu0 %v276
    %638 = vmatpush.msra.mxu0 %v272
    %639 = vmatpush.msra.mxu0 %v268
    %640 = vmatpush.msra.mxu0 %v264
    %641 = vmatpush.msra.mxu0 %v260
    %642 = vmatpush.msra.mxu0 %v256
    %643 = vmatmul.f32.gmra.mxu0 %v322
    %v644 = vpop.f32.mrf.mxu0
    %v645 = vadd.f32 %v625, %v644
    %646 = vdwg.mxu0
    %v647 = vmul.f32 %v405, %v405
    %v648 = vmul.f32 %v485, %v485
    %v649 = vmul.f32 %v565, %v565
    %v650 = vmul.f32 %v645, %v645
    %v651 = vadd.f32 %v647, %v649
    %v652 = vadd.f32 %v648, %v650
    %v653 = vld [vmem:[#allocation7] sm:$0xff]
    %v654 = vld [vmem:[#allocation7 + $0x8] sm:$0xff]
    %v655 = vld [vmem:[#allocation7 + $0x10] sm:$0xff]
    %v656 = vld [vmem:[#allocation7 + $0x18] sm:$0xff]
    %v657 = vld [vmem:[#allocation7 + $0x20] sm:$0xff]
    %v658 = vld [vmem:[#allocation7 + $0x28] sm:$0xff]
    %v659 = vld [vmem:[#allocation7 + $0x30] sm:$0xff]
    %v660 = vld [vmem:[#allocation7 + $0x38] sm:$0xff]
    %v661 = vld [vmem:[#allocation7 + $0x40] sm:$0xff]
    %v662 = vld [vmem:[#allocation7 + $0x48] sm:$0xff]
    %v663 = vld [vmem:[#allocation7 + $0x50] sm:$0xff]
    %v664 = vld [vmem:[#allocation7 + $0x58] sm:$0xff]
    %v665 = vld [vmem:[#allocation7 + $0x60] sm:$0xff]
    %v666 = vld [vmem:[#allocation7 + $0x68] sm:$0xff]
    %v667 = vld [vmem:[#allocation7 + $0x70] sm:$0xff]
    %v668 = vld [vmem:[#allocation7 + $0x78] sm:$0xff]
    %v669 = vld [vmem:[#allocation7 + $0x80] sm:$0xff]
    %v670 = vld [vmem:[#allocation7 + $0x88] sm:$0xff]
    %v671 = vld [vmem:[#allocation7 + $0x90] sm:$0xff]
    %v672 = vld [vmem:[#allocation7 + $0x98] sm:$0xff]
    %v673 = vld [vmem:[#allocation7 + $0xa0] sm:$0xff]
    %v674 = vld [vmem:[#allocation7 + $0xa8] sm:$0xff]
    %v675 = vld [vmem:[#allocation7 + $0xb0] sm:$0xff]
    %v676 = vld [vmem:[#allocation7 + $0xb8] sm:$0xff]
    %v677 = vld [vmem:[#allocation7 + $0xc0] sm:$0xff]
    %v678 = vld [vmem:[#allocation7 + $0xc8] sm:$0xff]
    %v679 = vld [vmem:[#allocation7 + $0xd0] sm:$0xff]
    %v680 = vld [vmem:[#allocation7 + $0xd8] sm:$0xff]
    %v681 = vld [vmem:[#allocation7 + $0xe0] sm:$0xff]
    %v682 = vld [vmem:[#allocation7 + $0xe8] sm:$0xff]
    %v683 = vld [vmem:[#allocation7 + $0xf0] sm:$0xff]
    %v684 = vld [vmem:[#allocation7 + $0xf8] sm:$0xff]
    %685 = vmatpush.msra.mxu0 %v668
    %686 = vmatpush.msra.mxu0 %v667
    %687 = vmatpush.msra.mxu0 %v666
    %688 = vmatpush.msra.mxu0 %v665
    %689 = vmatpush.msra.mxu0 %v664
    %690 = vmatpush.msra.mxu0 %v663
    %691 = vmatpush.msra.mxu0 %v662
    %692 = vmatpush.msra.mxu0 %v661
    %693 = vmatpush.msra.mxu0 %v660
    %694 = vmatpush.msra.mxu0 %v659
    %695 = vmatpush.msra.mxu0 %v658
    %696 = vmatpush.msra.mxu0 %v657
    %697 = vmatpush.msra.mxu0 %v656
    %698 = vmatpush.msra.mxu0 %v655
    %699 = vmatpush.msra.mxu0 %v654
    %700 = vmatpush.msra.mxu0 %v653
    %701 = vmatmul.f32.gmra.mxu0 %v651
    %v702 = vpop.f32.mrf.mxu0
    %v703 = vadd.f32 0.0, %v702
    %704 = vdwg.mxu0
    %705 = vmatpush.msra.mxu0 %v684
    %706 = vmatpush.msra.mxu0 %v683
    %707 = vmatpush.msra.mxu0 %v682
    %708 = vmatpush.msra.mxu0 %v681
    %709 = vmatpush.msra.mxu0 %v680
    %710 = vmatpush.msra.mxu0 %v679
    %711 = vmatpush.msra.mxu0 %v678
    %712 = vmatpush.msra.mxu0 %v677
    %713 = vmatpush.msra.mxu0 %v676
    %714 = vmatpush.msra.mxu0 %v675
    %715 = vmatpush.msra.mxu0 %v674
    %716 = vmatpush.msra.mxu0 %v673
    %717 = vmatpush.msra.mxu0 %v672
    %718 = vmatpush.msra.mxu0 %v671
    %719 = vmatpush.msra.mxu0 %v670
    %720 = vmatpush.msra.mxu0 %v669
    %721 = vmatmul.f32.gmra.mxu0 %v652
    %v722 = vpop.f32.mrf.mxu0
    %v723 = vadd.f32 %v703, %v722
    %724 = vdwg.mxu0
    %v725 = vlaneseq
    %v726 = vand.u32 %v725, 127
    %vm727 = vcmp.lt.s32.totalorder %v726, 4
    %v728 = vsel %vm727, %v723, -1e+30
    %vm729 = vcmask 1041408
    %v730 = vsel %vm729, %v728, -inf
    %731 = vmax.xlane.f32.xlu0 %v730
    %v732 = vpop.xlane.xlu0 %731
    %v733 = vsub.f32 %v728, %v732
    %v734 = vmul.f32 %v733, 1.442695
    %v735 = vpow.pop %v734
    %v736 = vsel %vm727, %v735, 0.0
    %v737 = vsel %vm729, %v736, 0.0
    %738 = vadd.xlane.f32.xlu0 %v737
    %v739 = vpop.xlane.xlu0 %738
    %v740 = vrcp.pop %v739
    %v741 = vmul.f32 %v736, %v740
    %742 = vst [vmem:[#allocation8] sm:$0x3] %v741
    // Predicated region
    $region26: #{tpu_custom_call.1} parent=1 // pred_check
      _
    $region27: #{tpu_custom_call.1} parent=1 // pred_check_branch
      %744 = sbr.rel (0) target = $region29
    $region28: #{tpu_custom_call.1} parent=1 // pred_region
      %746 = vsyncadd [#allocation4], 0
      %s748 = sshll.u32 [#allocation8], 4
      %s749 = int_to_ptr.vmem [resolvable:$true] %s748
      %s750 = sshll.u32 %s3, 4
      %s751 = int_to_ptr.hbm [resolvable:$true] %s750
      %753 = dma.vmem_to_hbm [thread:$0]  %s749, 32, %s751, [#allocation4]
    $region29: #{tpu_custom_call.1} parent=1 // pred_fallthru
      _
    // Predicated region
    $region30: #{tpu_custom_call.1} parent=1 // pred_check
      _
    $region31: #{tpu_custom_call.1} parent=1 // pred_check_branch
      %755 = sbr.rel (0) target = $region33
    $region32: #{tpu_custom_call.1} parent=1 // pred_region
      %757 = dma.done [#allocation4], 32
    $region33: #{tpu_custom_call.1} parent=1 // pred_fallthru
      _
    %758 = vsyncpa [#allocation3], 1
    %759 = vsyncpa [#allocation6], 1
    %760 = vsyncpa [#allocation4], 1

</llo_original>
